<compile_context>
chip_gen: v6e
topology: v6e:2x2x1
jax: 0.10.0
libtpu: 0.0.40
codegen_flags: <defaults>
</compile_context>

<pallas_src>
import math

import jax
import jax.numpy as jnp
from jax import lax
from jax.experimental import pallas as pl
from jax.experimental.pallas import tpu as pltpu


_VMEM_LIMIT = 48 * 1024 * 1024          # safe on v5e/v6e (128 MiB) and v7x (64 MiB)
_TARGET_TILE_BYTES = 2 << 20            # ~2 MiB per streamed buffer (~85%+ HBM roofline)


def _spatial_tile(S, C, itemsize, target_bytes=_TARGET_TILE_BYTES):
    """Pick a lane-dense spatial tile: multiple of 128, roughly `target_bytes`."""
    budget = max(128, (target_bytes // max(1, C * itemsize)) // 128 * 128)
    s_pad128 = pl.cdiv(S, 128) * 128
    return min(budget, s_pad128)


# ---------------------------------------------------------------------------
# Pallas kernel 1: global max over the flattened spatial axis (per B, C).
# ---------------------------------------------------------------------------
def _chan_max_kernel(x_ref, o_ref):
    s = pl.program_id(1)
    part = jnp.max(x_ref[...], axis=-1).reshape(1, 1, -1)   # (1, 1, C)

    @pl.when(s == 0)
    def _():
        o_ref[...] = part

    @pl.when(s > 0)
    def _():
        o_ref[...] = jnp.maximum(o_ref[...], part)


def channel_max_pool(x_flat, ts):
    """x_flat: (B, C, S) float -> (B, C) max over S."""
    B, C, S = x_flat.shape
    s_pad = pl.cdiv(S, ts) * ts
    if s_pad != S:
        # Pad with -inf so it never wins the max (wrapper-level spatial padding).
        x_flat = jnp.pad(x_flat, ((0, 0), (0, 0), (0, s_pad - S)),
                         constant_values=-jnp.inf)

    out = pl.pallas_call(
        _chan_max_kernel,
        out_shape=jax.ShapeDtypeStruct((B, 1, C), x_flat.dtype),
        grid=(B, s_pad // ts),
        in_specs=[pl.BlockSpec((1, C, ts), lambda b, s: (b, 0, s))],
        out_specs=pl.BlockSpec((1, 1, C), lambda b, s: (b, 0, 0)),
        compiler_params=pltpu.CompilerParams(
            dimension_semantics=("parallel", "arbitrary"),
            vmem_limit_bytes=_VMEM_LIMIT),
    )(x_flat)
    return out.reshape(B, C)


# ---------------------------------------------------------------------------
# Pallas kernel 2: fused FiLM modulation + residual add (streamed, HBM-bound).
#   out[b, c, s] = res[b, c, s] * m[b, c] + skip[b, c, s]
# m arrives pre-shaped (B, C, 1) so no in-kernel reshape / relayout is needed.
# ---------------------------------------------------------------------------
def _film_residual_kernel(m_ref, res_ref, skip_ref, o_ref):
    o_ref[...] = res_ref[...] * m_ref[...] + skip_ref[...]


def film_modulate_residual(res_flat, skip_flat, m, ts):
    """res_flat, skip_flat: (B, C, S); m: (B, C). Returns (B, C, S)."""
    B, C, S = res_flat.shape
    s_pad = pl.cdiv(S, ts) * ts
    if s_pad != S:
        pad = ((0, 0), (0, 0), (0, s_pad - S))
        res_flat = jnp.pad(res_flat, pad)
        skip_flat = jnp.pad(skip_flat, pad)

    m3 = m.reshape(B, C, 1).astype(res_flat.dtype)

    out = pl.pallas_call(
        _film_residual_kernel,
        out_shape=jax.ShapeDtypeStruct((B, C, s_pad), res_flat.dtype),
        grid=(B, s_pad // ts),
        in_specs=[
            pl.BlockSpec((1, C, 1), lambda b, s: (b, 0, 0)),    # m (tiny, revisited)
            pl.BlockSpec((1, C, ts), lambda b, s: (b, 0, s)),   # res (aliased to out)
            pl.BlockSpec((1, C, ts), lambda b, s: (b, 0, s)),   # skip
        ],
        out_specs=pl.BlockSpec((1, C, ts), lambda b, s: (b, 0, s)),
        input_output_aliases={1: 0},   # write in place over the dead conv result
        compiler_params=pltpu.CompilerParams(
            dimension_semantics=("parallel", "parallel"),
            vmem_limit_bytes=_VMEM_LIMIT),
    )(m3, res_flat, skip_flat)

    if s_pad != S:
        out = out[..., :S]
    return out


# ---------------------------------------------------------------------------
# Non-Pallas building blocks.
# ---------------------------------------------------------------------------
def _conv3d(x, w):
    # TODO(synk): the k^3 3-D convolutions are delegated to XLA's native MXU conv
    # (lax.conv_general_dilated); a hand-rolled Pallas conv3d is out of scope here.
    return lax.conv_general_dilated(
        x, w, window_strides=(1, 1, 1), padding="SAME",
        dimension_numbers=("NCDHW", "OIDHW", "NCDHW"))


def _prelu(x, alpha):
    return jnp.where(x >= 0, x, alpha * x)


# ---------------------------------------------------------------------------
# CAB_wNLE / ORB_wNLE forward (Pallas path).
# ---------------------------------------------------------------------------
def _cab_forward(x, nle, p, ts):
    B, C = x.shape[0], x.shape[1]
    S = math.prod(x.shape[2:])

    # body: conv -> act -> conv
    r = _conv3d(x, p["w_body1"])
    r = _prelu(r, p["act_alpha"])
    r = _conv3d(r, p["w_body2"])

    r_flat = r.reshape(B, C, S)

    # Channel-attention gate with NLE modulation. The squeeze/excite MLP and the
    # beta/gamma FiLM are tiny (B, C)-sized ops -> hoisted out of the streaming
    # kernel and computed once per batch here (perf feedback #3).
    pooled = channel_max_pool(r_flat, ts)                      # (B, C)  [Pallas]
    h = jnp.maximum(pooled @ p["w_du1"], 0.0)                  # ReLU
    y = jax.nn.sigmoid(h @ p["w_du2"])                         # (B, C)
    beta, gamma = nle[:, :C], nle[:, C:]
    m = y * beta + gamma                                       # (B, C)

    out_flat = film_modulate_residual(r_flat, x.reshape(B, C, S), m, ts)  # [Pallas]
    return out_flat.reshape(x.shape)


def orb_forward(x, nle, params):
    B, C = x.shape[0], x.shape[1]
    S = math.prod(x.shape[2:])
    ts = _spatial_tile(S, C, x.dtype.itemsize)

    res = x
    for p in params["cabs"]:
        res = _cab_forward(res, nle, p, ts)

    res = _conv3d(res, params["w_tail"])
    # Final residual add, reusing the streaming kernel with m == 1.
    ones = jnp.ones((B, C), x.dtype)
    out_flat = film_modulate_residual(res.reshape(B, C, S),
                                      x.reshape(B, C, S), ones, ts)
    return out_flat.reshape(x.shape)


# ---------------------------------------------------------------------------
# Parameter init + pure-JAX reference.
# ---------------------------------------------------------------------------
def init_orb_params(key, n_feat, kernel_size, reduction, num_cab=8):
    def uniform(k, shape, fan_in):
        bound = math.sqrt(1.0 / fan_in)
        return jax.random.uniform(k, shape, jnp.float32, -bound, bound)

    hidden = max(1, n_feat // reduction)
    keys = jax.random.split(key, num_cab * 4 + 1)
    cabs = []
    for i in range(num_cab):
        k1, k2, k3, k4 = keys[4 * i: 4 * i + 4]
        fan_body = n_feat * kernel_size ** 3
        cabs.append({
            "w_body1": uniform(k1, (n_feat, n_feat) + (kernel_size,) * 3, fan_body),
            "w_body2": uniform(k2, (n_feat, n_feat) + (kernel_size,) * 3, fan_body),
            "act_alpha": jnp.asarray(0.25, jnp.float32),       # PReLU (channel-shared)
            "w_du1": uniform(k3, (n_feat, hidden), n_feat),
            "w_du2": uniform(k4, (hidden, n_feat), hidden),
        })
    w_tail = uniform(keys[-1], (n_feat, n_feat) + (kernel_size,) * 3,
                     n_feat * kernel_size ** 3)
    return {"cabs": cabs, "w_tail": w_tail}


def orb_reference(x, nle, params):
    C = x.shape[1]
    res = x
    for p in params["cabs"]:
        r = _conv3d(res, p["w_body1"])
        r = _prelu(r, p["act_alpha"])
        r = _conv3d(r, p["w_body2"])
        pooled = jnp.max(r, axis=(2, 3, 4))                    # AdaptiveMaxPool3d(1)
        y = jax.nn.sigmoid(jnp.maximum(pooled @ p["w_du1"], 0.0) @ p["w_du2"])
        m = y * nle[:, :C] + nle[:, C:]
        res = r * m[:, :, None, None, None] + res
    r = _conv3d(res, params["w_tail"])
    return r + x


if __name__ == "__main__":
    batch, n_feat, kernel_size, reduction = 2, 8, 3, 4
    D, H, W = 4, 8, 8                       # S = 256 (multiple of 128)
    nle_dim = 2 * n_feat

    key = jax.random.PRNGKey(0)
    kx, kn, kp = jax.random.split(key, 3)
    x = jax.random.normal(kx, (batch, n_feat, D, H, W), jnp.float32)
    noiselevel_feat = jax.random.normal(kn, (batch, nle_dim), jnp.float32)
    params = init_orb_params(kp, n_feat, kernel_size, reduction)

    out = jax.jit(orb_forward)(x, noiselevel_feat, params)
    out = jax.block_until_ready(out)

    ref = orb_reference(x, noiselevel_feat, params)
    assert out.shape == x.shape
    assert jnp.allclose(out, ref, atol=1e-3, rtol=1e-3), "mismatch vs reference"

    print("KERNEL_OK")
</pallas_src>

<mosaic_0001>
module attributes {stable_mosaic.version = 11 : i64} {
  func.func @_chan_max_kernel(%arg0: i32, %arg1: i32, %arg2: memref<1x8x256xf32, #tpu.memory_space<vmem>>, %arg3: memref<1x1x8xf32, #tpu.memory_space<vmem>>) attributes {dimension_semantics = [#tpu.dimension_semantics<parallel>, #tpu.dimension_semantics<arbitrary>], iteration_bounds = array<i64: 2, 1>, scalar_prefetch = 0 : i64, scratch_operands = 0 : i64, tpu.core_type = #tpu.core_type<tc>, window_params = [{transform_indices = @transform_0, window_bounds = array<i64: 1, 8, 256>}, {transform_indices = @transform_1, window_bounds = array<i64: 1, 1, 8>}]} {
    %c0 = arith.constant 0 : index
    %c0_0 = arith.constant 0 : index
    %c0_1 = arith.constant 0 : index
    %0 = vector.load %arg2[%c0, %c0_0, %c0_1] : memref<1x8x256xf32, #tpu.memory_space<vmem>>, vector<1x8x256xf32>
    %cst = arith.constant dense<0xFF800000> : vector<1x8xf32>
    %1 = vector.multi_reduction <maximumf>, %0, %cst [2] : vector<1x8x256xf32> to vector<1x8xf32>
    %2 = vector.shape_cast %1 : vector<1x8xf32> to vector<1x1x8xf32>
    %c0_i32 = arith.constant 0 : i32
    %3 = arith.cmpi eq, %arg1, %c0_i32 : i32
    %4 = arith.extui %3 : i1 to i32
    %c0_i32_2 = arith.constant 0 : i32
    %5 = arith.cmpi ne, %4, %c0_i32_2 : i32
    scf.if %5 {
      %c0_5 = arith.constant 0 : index
      %c0_6 = arith.constant 0 : index
      %c0_7 = arith.constant 0 : index
      %9 = vector.load %arg3[%c0_5, %c0_6, %c0_7] : memref<1x1x8xf32, #tpu.memory_space<vmem>>, vector<1x1x8xf32>
      tpu.vector_store %arg3[%c0_5, %c0_6, %c0_7], %2 {strides = array<i32>} : memref<1x1x8xf32, #tpu.memory_space<vmem>>, vector<1x1x8xf32>,
    } else {
    }
    %c0_i32_3 = arith.constant 0 : i32
    %6 = arith.cmpi sgt, %arg1, %c0_i32_3 : i32
    %7 = arith.extui %6 : i1 to i32
    %c0_i32_4 = arith.constant 0 : i32
    %8 = arith.cmpi ne, %7, %c0_i32_4 : i32
    scf.if %8 {
      %c0_5 = arith.constant 0 : index
      %c0_6 = arith.constant 0 : index
      %c0_7 = arith.constant 0 : index
      %9 = vector.load %arg3[%c0_5, %c0_6, %c0_7] : memref<1x1x8xf32, #tpu.memory_space<vmem>>, vector<1x1x8xf32>
      %10 = arith.maximumf %9, %2 : vector<1x1x8xf32>
      %c0_8 = arith.constant 0 : index
      %c0_9 = arith.constant 0 : index
      %c0_10 = arith.constant 0 : index
      %11 = vector.load %arg3[%c0_8, %c0_9, %c0_10] : memref<1x1x8xf32, #tpu.memory_space<vmem>>, vector<1x1x8xf32>
      tpu.vector_store %arg3[%c0_8, %c0_9, %c0_10], %10 {strides = array<i32>} : memref<1x1x8xf32, #tpu.memory_space<vmem>>, vector<1x1x8xf32>,
    } else {
    }
    return
  }
  func.func @transform_0(%arg0: i32, %arg1: i32) -> (i32, i32, i32) {
    %c0_i32 = arith.constant 0 : i32
    %c0_i32_0 = arith.constant 0 : i32
    return %arg0, %c0_i32, %arg1 : i32, i32, i32
  }
  func.func @transform_1(%arg0: i32, %arg1: i32) -> (i32, i32, i32) {
    %c0_i32 = arith.constant 0 : i32
    %c0_i32_0 = arith.constant 0 : i32
    %c0_i32_1 = arith.constant 0 : i32
    return %arg0, %c0_i32, %c0_i32_0 : i32, i32, i32
  }
}

module attributes {stable_mosaic.version = 11 : i64} {
  func.func @_film_residual_kernel(%arg0: i32, %arg1: i32, %arg2: memref<1x8x1xf32, #tpu.memory_space<vmem>>, %arg3: memref<1x8x256xf32, #tpu.memory_space<vmem>>, %arg4: memref<1x8x256xf32, #tpu.memory_space<vmem>>, %arg5: memref<1x8x256xf32, #tpu.memory_space<vmem>>) attributes {dimension_semantics = [#tpu.dimension_semantics<parallel>, #tpu.dimension_semantics<parallel>], iteration_bounds = array<i64: 2, 1>, scalar_prefetch = 0 : i64, scratch_operands = 0 : i64, tpu.core_type = #tpu.core_type<tc>, window_params = [{transform_indices = @transform_0, window_bounds = array<i64: 1, 8, 1>}, {transform_indices = @transform_1, window_bounds = array<i64: 1, 8, 256>}, {transform_indices = @transform_2, window_bounds = array<i64: 1, 8, 256>}, {transform_indices = @transform_3, window_bounds = array<i64: 1, 8, 256>}]} {
    %c0 = arith.constant 0 : index
    %c0_0 = arith.constant 0 : index
    %c0_1 = arith.constant 0 : index
    %0 = vector.load %arg3[%c0, %c0_0, %c0_1] : memref<1x8x256xf32, #tpu.memory_space<vmem>>, vector<1x8x256xf32>
    %c0_2 = arith.constant 0 : index
    %c0_3 = arith.constant 0 : index
    %c0_4 = arith.constant 0 : index
    %1 = vector.load %arg2[%c0_2, %c0_3, %c0_4] : memref<1x8x1xf32, #tpu.memory_space<vmem>>, vector<1x8x1xf32>
    %2 = vector.broadcast %1 : vector<1x8x1xf32> to vector<1x8x256xf32>
    %3 = arith.mulf %0, %2 : vector<1x8x256xf32>
    %c0_5 = arith.constant 0 : index
    %c0_6 = arith.constant 0 : index
    %c0_7 = arith.constant 0 : index
    %4 = vector.load %arg4[%c0_5, %c0_6, %c0_7] : memref<1x8x256xf32, #tpu.memory_space<vmem>>, vector<1x8x256xf32>
    %5 = arith.addf %3, %4 : vector<1x8x256xf32>
    %c0_8 = arith.constant 0 : index
    %c0_9 = arith.constant 0 : index
    %c0_10 = arith.constant 0 : index
    %6 = vector.load %arg5[%c0_8, %c0_9, %c0_10] : memref<1x8x256xf32, #tpu.memory_space<vmem>>, vector<1x8x256xf32>
    tpu.vector_store %arg5[%c0_8, %c0_9, %c0_10], %5 {strides = array<i32>} : memref<1x8x256xf32, #tpu.memory_space<vmem>>, vector<1x8x256xf32>,
    return
  }
  func.func @transform_0(%arg0: i32, %arg1: i32) -> (i32, i32, i32) {
    %c0_i32 = arith.constant 0 : i32
    %c0_i32_0 = arith.constant 0 : i32
    %c0_i32_1 = arith.constant 0 : i32
    return %arg0, %c0_i32, %c0_i32_0 : i32, i32, i32
  }
  func.func @transform_1(%arg0: i32, %arg1: i32) -> (i32, i32, i32) {
    %c0_i32 = arith.constant 0 : i32
    %c0_i32_0 = arith.constant 0 : i32
    return %arg0, %c0_i32, %arg1 : i32, i32, i32
  }
  func.func @transform_2(%arg0: i32, %arg1: i32) -> (i32, i32, i32) {
    %c0_i32 = arith.constant 0 : i32
    %c0_i32_0 = arith.constant 0 : i32
    return %arg0, %c0_i32, %arg1 : i32, i32, i32
  }
  func.func @transform_3(%arg0: i32, %arg1: i32) -> (i32, i32, i32) {
    %c0_i32 = arith.constant 0 : i32
    %c0_i32_0 = arith.constant 0 : i32
    return %arg0, %c0_i32, %arg1 : i32, i32, i32
  }
}

</mosaic_0001>

<llo_original>
// kernel: orb_forward.17
$region0: #{orb_forward.17}
  #allocation0 [shape = 'u32[]', space=smem, size = 0x4, offset = 0x4, fixed_abs, tag = 'smem constant byte address 0x4 - core index']
  #allocation1 [shape = 'u32[144,128]{1,0:T(1,128)}', space=vmem, size = 0x12000, scoped, tag = 'internal scratch']
  %s0 = inlined_call_operand.vmem [shape: f32[2,8,256], index: 0, kind: input, shape index: {}]
  %s1 = inlined_call_operand.vmem [shape: f32[2,1,8], index: 1, kind: output, shape index: {}]
  %s2 = sld [smem:[#allocation0]]
  $region45: #{orb_forward.17} parent=0
    _
  %s4 = ssub.s32 1, %s2
  %s5 = scalar_select 0, %s4, %s2
  loop: start=0, step=1, limit=4
  $region2: #{orb_forward.17} parent=0 // loop_pre_header
    _
  $region3: #{orb_forward.17} parent=0 // loop_header
    %s7 = sphi 0, %s11
    %p8 = scmp.ge.s32.totalorder %s7, 4
    %s14 = sphi 0, %s26
    %s15 = sphi 0, %s22
    %s16 = sphi 0, %s14
    %s17 = sphi 0, %s15
    %s18 = sphi 0, %s16
    %s19 = sphi 0, %s17
    %s31 = sphi 0, %s33
    %s34 = sphi 0, %s31
    %s35 = sphi 0, %s34
    %s51 = sphi 0, %s35
    %s57 = sphi 0, %s59
    %s60 = sphi 0, %s57
    %s61 = sphi 0, %s60
    %s77 = sphi 0, %s61
  $region4: #{orb_forward.17} parent=0 // loop_header_branch
    %10 = sbr.rel (%p8) target = $region8
  $region5: #{orb_forward.17} parent=0 // loop_body
    %s12 = ssub.s32 %s7, 1
    %s13 = ssub.s32 %s7, 2
    %s20 = sadd.s32 1, %s15
    %p21 = scmp.ge.s32.totalorder %s20, 1
    %s22 = scalar_select %p21, 0, %s20
    %s23 = sadd.s32 1, %s14
    %s24 = scalar_select %p21, %s23, %s14
    %p25 = scmp.ge.s32.totalorder %s24, 2
    %s26 = scalar_select %p25, 0, %s24
    %s27 = ssub.s32 %s14, %s26
    %s28 = ssub.s32 %s15, %s22
    %s29 = sor.u32 %s27, %s28
    %p30 = scmp.eq.s32.totalorder %s29, 0
    %s32 = sadd.s32 %s31, 1
    %s33 = scalar_select %p30, %s31, %s32
    %p36 = pneg %p30
    %p37 = scmp.eq.s32.totalorder %s7, 1
    %p38 = por %p36, %p37
    %p39 = scmp.ne.s32.totalorder %s31, %s34
    %p40 = scmp.eq.s32.totalorder %s7, 0
    %p41 = por %p39, %p40
    %p42 = scmp.ne.s32.totalorder %s31, %s34
    %p43 = scmp.eq.s32.totalorder %s12, 1
    %p44 = por %p42, %p43
    %p45 = scmp.ne.s32.totalorder %s34, %s35
    %p46 = scmp.eq.s32.totalorder %s12, 0
    %p47 = por %p45, %p46
    %p48 = scmp.ne.s32.totalorder %s34, %s35
    %p49 = scmp.eq.s32.totalorder %s13, 1
    %p50 = por %p48, %p49
    %p52 = scmp.ne.s32.totalorder %s35, %s51
    %p53 = scmp.eq.s32.totalorder %s13, 0
    %p54 = por %p52, %p53
    %s55 = ssub.s32 %s14, %s26
    %p56 = scmp.eq.s32.totalorder %s55, 0
    %s58 = sadd.s32 %s57, 1
    %s59 = scalar_select %p56, %s57, %s58
    %p62 = pneg %p56
    %p63 = scmp.eq.s32.totalorder %s7, 1
    %p64 = por %p62, %p63
    %p65 = scmp.ne.s32.totalorder %s57, %s60
    %p66 = scmp.eq.s32.totalorder %s7, 0
    %p67 = por %p65, %p66
    %p68 = scmp.ne.s32.totalorder %s57, %s60
    %p69 = scmp.eq.s32.totalorder %s12, 1
    %p70 = por %p68, %p69
    %p71 = scmp.ne.s32.totalorder %s60, %s61
    %p72 = scmp.eq.s32.totalorder %s12, 0
    %p73 = por %p71, %p72
    %p74 = scmp.ne.s32.totalorder %s60, %s61
    %p75 = scmp.eq.s32.totalorder %s13, 1
    %p76 = por %p74, %p75
    %p78 = scmp.ne.s32.totalorder %s61, %s77
    %p79 = scmp.eq.s32.totalorder %s13, 0
    %p80 = por %p78, %p79
    %p81 = scmp.le.s32.totalorder 1, %s7
    %p82 = scmp.lt.s32.totalorder %s7, 3
    %p83 = pnand %p81, %p82
    %p84 = pneg %p83
    // Predicated region
    $region9: #{orb_forward.17} parent=5 // pred_check
      _
    $region10: #{orb_forward.17} parent=5 // pred_check_branch
      %86 = sbr.rel (%p83) target = $region12
    $region11: #{orb_forward.17} parent=5 // pred_region
      %s87 = ssub.s32 %s7, 1
    $region12: #{orb_forward.17} parent=5 // pred_fallthru
      _
    %p88 = scmp.lt.s32.totalorder %s7, 2
    // Predicated region
    $region13: #{orb_forward.17} parent=5 // pred_check
      %p89 = pneg %p88
    $region14: #{orb_forward.17} parent=5 // pred_check_branch
      %91 = sbr.rel (%p89) target = $region16
    $region15: #{orb_forward.17} parent=5 // pred_region
      // Predicated region
      $region17: #{orb_forward.17} parent=15 // pred_check
        %p92 = pneg %p41
      $region18: #{orb_forward.17} parent=15 // pred_check_branch
        %94 = sbr.rel (%p92) target = $region20
      $region19: #{orb_forward.17} parent=15 // pred_region
        %s95 = smul.u32 2, %s15
        %p96 = scmp.lt.s32.totalorder %s14, 1
        %s97 = scalar_select %p96, %s14, 1
        %p98 = scmp.lt.s32.totalorder %s95, 1
        %s99 = scalar_select %p98, %s95, 1
        %s100 = smul.addr %s97, 2
        %s101 = sadd.s32 %s99, %s100
        %s102 = smul.addr %s101, 8
        %s103 = scalar_lea.vmem %s0, %s102
        %s104 = smul.u32 2, %s15
      $region20: #{orb_forward.17} parent=15 // pred_fallthru
        _
    $region16: #{orb_forward.17} parent=5 // pred_fallthru
      _
    %p105 = scmp.le.s32.totalorder 1, %s7
    %p106 = scmp.lt.s32.totalorder %s7, 3
    %p107 = pnand %p105, %p106
    %p108 = pneg %p107
    // Predicated region
    $region21: #{orb_forward.17} parent=5 // pred_check
      _
    $region22: #{orb_forward.17} parent=5 // pred_check_branch
      %110 = sbr.rel (%p107) target = $region24
    $region23: #{orb_forward.17} parent=5 // pred_region
      %s111 = ssub.s32 %s7, 1
      %s112 = smul.u32 2, %s17
      %p113 = scmp.lt.s32.totalorder %s16, 1
      %s114 = scalar_select %p113, %s16, 1
      %p115 = scmp.lt.s32.totalorder %s112, 1
      %s116 = scalar_select %p115, %s112, 1
      %s117 = smul.addr %s114, 2
      %s118 = sadd.s32 %s116, %s117
      %s119 = smul.addr %s118, 8
      %s120 = scalar_lea.vmem %s0, %s119
      %p121 = pneg %p47
      %p122 = pneg %p44
      %p123 = pneg %p73
      %p124 = pneg %p70
      %p125 = scmp.lt.s32.totalorder %s16, 1
      %s126 = scalar_select %p125, %s16, 1
      %s127 = scalar_lea.vmem %s1, %s126
      %s128 = smul.u32 2, %s17
      %p129 = scmp.lt.s32.totalorder %s16, 1
      %s130 = scalar_select %p129, %s16, 1
      %p131 = scmp.lt.s32.totalorder %s128, 1
      %s132 = scalar_select %p131, %s128, 1
      %s133 = smul.addr %s130, 2
      %s134 = sadd.s32 %s132, %s133
      %s135 = smul.addr %s134, 8
      %s136 = scalar_lea.vmem %s0, %s135
      %s137 = smul.u32 2, %s17
      %p138 = scmp.lt.s32.totalorder %s16, 1
      %s139 = scalar_select %p138, %s16, 1
      %s140 = scalar_lea.vmem %s1, %s139
      %v141 = vld [vmem:[%s136] sm:$0xff]
      %v142 = vld [vmem:[%s136 + $0x8] sm:$0xff]
      %v143 = vmax.f32 %v141, %v142
      %144 = vmax.xlane.f32.xlu0 %v143
      %v145 = vpop.xlane.xlu0 %144
      %p146 = scmp.eq.s32.totalorder %s17, 0
      // Predicated region
      $region25: #{orb_forward.17} parent=23 // pred_check
        %p147 = pneg %p146
      $region26: #{orb_forward.17} parent=23 // pred_check_branch
        %149 = sbr.rel (%p147) target = $region28
      $region27: #{orb_forward.17} parent=23 // pred_region
        %v151 = vlaneseq
        %v152 = vand.u32 %v151, 127
        %v153 = vlaneseq
        %v154 = vshrl.u32 %v153, 7
        %v155 = vsub.s32 %v152, %v154
        %v156 = vrot.slane %v145, %v155
        %vm158 = vcmask 57344
        %159 = vst.msk [vmem:[%s140] sm:$0x1] %vm158, %v156
      $region28: #{orb_forward.17} parent=23 // pred_fallthru
        _
      %p160 = scmp.gt.s32.totalorder %s17, 0
      // Predicated region
      $region29: #{orb_forward.17} parent=23 // pred_check
        %p161 = pneg %p160
      $region30: #{orb_forward.17} parent=23 // pred_check_branch
        %163 = sbr.rel (%p161) target = $region32
      $region31: #{orb_forward.17} parent=23 // pred_region
        %v164 = vld [vmem:[%s140] sm:$0x1]
        %v166 = vlaneseq
        %v167 = vshrl.u32 %v166, 7
        %v168 = vsub.s32 0, %v167
        %v169 = vrot.slane %v145, %v168
        %v170 = vlaneseq
        %v171 = vshrl.u32 %v170, 7
        %v172 = vsub.s32 1, %v171
        %v173 = vrot.slane %v145, %v172
        %v174 = vlaneseq
        %v175 = vshrl.u32 %v174, 7
        %v176 = vsub.s32 2, %v175
        %v177 = vrot.slane %v145, %v176
        %v178 = vlaneseq
        %v179 = vshrl.u32 %v178, 7
        %v180 = vsub.s32 3, %v179
        %v181 = vrot.slane %v145, %v180
        %v182 = vlaneseq
        %v183 = vshrl.u32 %v182, 7
        %v184 = vsub.s32 4, %v183
        %v185 = vrot.slane %v145, %v184
        %v186 = vlaneseq
        %v187 = vshrl.u32 %v186, 7
        %v188 = vsub.s32 5, %v187
        %v189 = vrot.slane %v145, %v188
        %v190 = vlaneseq
        %v191 = vshrl.u32 %v190, 7
        %v192 = vsub.s32 6, %v191
        %v193 = vrot.slane %v145, %v192
        %v194 = vlaneseq
        %v195 = vshrl.u32 %v194, 7
        %v196 = vsub.s32 7, %v195
        %v197 = vrot.slane %v145, %v196
        %v198 = vcombine.low %v169, %v173
        %v199 = vcombine.low %v177, %v181
        %v200 = vcombine.low %v185, %v189
        %v201 = vcombine.low %v193, %v197
        %v203 = vunpack.c.l.s4 1966171168
        %v204 = vunpack.c.0.s8 %v203
        %v205 = vlaneseq
        %v206 = vshrl.u32 %v205, 7
        %v207 = vsub.s32 %v204, %v206
        %v208 = vrot.slane %v198, %v207
        %v210 = vunpack.c.l.s4 1966171168
        %v211 = vunpack.c.0.s8 %v210
        %v212 = vlaneseq
        %v213 = vshrl.u32 %v212, 7
        %v214 = vsub.s32 %v211, %v213
        %v215 = vrot.slane %v199, %v214
        %v217 = vunpack.c.l.s4 1966171168
        %v218 = vunpack.c.0.s8 %v217
        %v219 = vlaneseq
        %v220 = vshrl.u32 %v219, 7
        %v221 = vsub.s32 %v218, %v220
        %v222 = vrot.slane %v200, %v221
        %v224 = vunpack.c.l.s4 1966171168
        %v225 = vunpack.c.0.s8 %v224
        %v226 = vlaneseq
        %v227 = vshrl.u32 %v226, 7
        %v228 = vsub.s32 %v225, %v227
        %v229 = vrot.slane %v201, %v228
        %v230 = vcombine.low %v208, %v215
        %v231 = vcombine.low %v222, %v229
        %v233 = vunpack.c.l.s4 1966171168
        %v234 = vunpack.c.0.s8 %v233
        %v235 = vlaneseq
        %v236 = vshrl.u32 %v235, 7
        %v237 = vsub.s32 %v234, %v236
        %v238 = vrot.slane %v230, %v237
        %v240 = vunpack.c.l.s4 1966171168
        %v241 = vunpack.c.0.s8 %v240
        %v242 = vlaneseq
        %v243 = vshrl.u32 %v242, 7
        %v244 = vsub.s32 %v241, %v243
        %v245 = vrot.slane %v231, %v244
        %v246 = vcombine.low %v238, %v245
        %247 = vset.pattern.permute.xlu0 0
        %248 = vperm.xlu0 %247, %v246
        %v249 = vpop.permute.xlu0 %248
        %v250 = vlaneseq
        %v251 = vand.u32 %v250, 127
        %v252 = vlaneseq
        %v253 = vshrl.u32 %v252, 7
        %v254 = vsub.s32 %v251, %v253
        %v255 = vrot.slane %v249, %v254
        %v257 = vunpack.c.l.s4 1966171168
        %v258 = vunpack.c.0.s8 %v257
        %v259 = vlaneseq
        %v260 = vshrl.u32 %v259, 7
        %v261 = vsub.s32 %v258, %v260
        %v262 = vrot.slane %v255, %v261
        %v264 = vunpack.c.l.s4 1966171168
        %v265 = vunpack.c.0.s8 %v264
        %v266 = vlaneseq
        %v267 = vshrl.u32 %v266, 7
        %v268 = vsub.s32 %v265, %v267
        %v269 = vrot.slane %v262, %v268
        %v271 = vmax.f32 %v164, %v269
        %vm272 = vcmask 57344
        %273 = vst.msk [vmem:[%s140] sm:$0x1] %vm272, %v271
      $region32: #{orb_forward.17} parent=23 // pred_fallthru
        _
      %p274 = scmp.lt.s32.totalorder %s16, 1
      %s275 = scalar_select %p274, %s16, 1
      %s276 = scalar_lea.vmem %s1, %s275
      // Predicated region
      $region33: #{orb_forward.17} parent=23 // pred_check
        %p277 = pneg %p70
      $region34: #{orb_forward.17} parent=23 // pred_check_branch
        %279 = sbr.rel (%p277) target = $region36
      $region35: #{orb_forward.17} parent=23 // pred_region
        _
      $region36: #{orb_forward.17} parent=23 // pred_fallthru
        _
    $region24: #{orb_forward.17} parent=5 // pred_fallthru
      _
    %p280 = scmp.le.s32.totalorder 2, %s7
    // Predicated region
    $region37: #{orb_forward.17} parent=5 // pred_check
      %p281 = pneg %p280
    $region38: #{orb_forward.17} parent=5 // pred_check_branch
      %283 = sbr.rel (%p281) target = $region40
    $region39: #{orb_forward.17} parent=5 // pred_region
      %s284 = ssub.s32 %s7, 2
      // Predicated region
      $region41: #{orb_forward.17} parent=39 // pred_check
        %p285 = pneg %p76
      $region42: #{orb_forward.17} parent=39 // pred_check_branch
        %287 = sbr.rel (%p285) target = $region44
      $region43: #{orb_forward.17} parent=39 // pred_region
        %p288 = scmp.lt.s32.totalorder %s18, 1
        %s289 = scalar_select %p288, %s18, 1
        %s290 = scalar_lea.vmem %s1, %s289
      $region44: #{orb_forward.17} parent=39 // pred_fallthru
        _
    $region40: #{orb_forward.17} parent=5 // pred_fallthru
      _
  $region6: #{orb_forward.17} parent=0 // loop_footer
    %s11 = sadd.s32 1, %s7
  $region7: #{orb_forward.17} parent=0 // loop_footer_branch
    %6 = sbr.rel target = $region3
  $region8: #{orb_forward.17} parent=0 // loop_exit
    _

// kernel: orb_forward.18
$region0: #{orb_forward.18}
  #allocation0 [shape = 'u32[]', space=smem, size = 0x4, offset = 0x4, fixed_abs, tag = 'smem constant byte address 0x4 - core index']
  #allocation1 [shape = 'u32[144,128]{1,0:T(1,128)}', space=vmem, size = 0x12000, scoped, tag = 'internal scratch']
  %s0 = inlined_call_operand.vmem [shape: f32[2,8,1], index: 0, kind: input, shape index: {}]
  %s1 = inlined_call_operand.vmem [shape: f32[2,8,256], index: 1, kind: input, shape index: {}, may-alias: {1,3}]
  %s2 = inlined_call_operand.vmem [shape: f32[2,8,256], index: 2, kind: input, shape index: {}]
  %s3 = inlined_call_operand.vmem [shape: f32[2,8,256], index: 3, kind: output, shape index: {}, may-alias: {1,3}]
  %s4 = sld [smem:[#allocation0]]
  $region45: #{orb_forward.18} parent=0
    _
  %s6 = ssub.s32 1, %s4
  %s7 = scalar_select 0, %s6, %s4
  loop: start=0, step=1, limit=4
  $region2: #{orb_forward.18} parent=0 // loop_pre_header
    _
  $region3: #{orb_forward.18} parent=0 // loop_header
    %s9 = sphi 0, %s13
    %p10 = scmp.ge.s32.totalorder %s9, 4
    %s16 = sphi 0, %s28
    %s17 = sphi 0, %s24
    %s18 = sphi 0, %s16
    %s19 = sphi 0, %s17
    %s20 = sphi 0, %s18
    %s21 = sphi 0, %s19
    %s31 = sphi 0, %s33
    %s34 = sphi 0, %s31
    %s35 = sphi 0, %s34
    %s51 = sphi 0, %s35
    %s59 = sphi 0, %s61
    %s62 = sphi 0, %s59
    %s63 = sphi 0, %s62
    %s79 = sphi 0, %s63
    %s87 = sphi 0, %s89
    %s90 = sphi 0, %s87
    %s91 = sphi 0, %s90
    %s107 = sphi 0, %s91
    %s115 = sphi 0, %s117
    %s118 = sphi 0, %s115
    %s119 = sphi 0, %s118
    %s135 = sphi 0, %s119
  $region4: #{orb_forward.18} parent=0 // loop_header_branch
    %12 = sbr.rel (%p10) target = $region8
  $region5: #{orb_forward.18} parent=0 // loop_body
    %s14 = ssub.s32 %s9, 1
    %s15 = ssub.s32 %s9, 2
    %s22 = sadd.s32 1, %s17
    %p23 = scmp.ge.s32.totalorder %s22, 1
    %s24 = scalar_select %p23, 0, %s22
    %s25 = sadd.s32 1, %s16
    %s26 = scalar_select %p23, %s25, %s16
    %p27 = scmp.ge.s32.totalorder %s26, 2
    %s28 = scalar_select %p27, 0, %s26
    %s29 = ssub.s32 %s16, %s28
    %p30 = scmp.eq.s32.totalorder %s29, 0
    %s32 = sadd.s32 %s31, 1
    %s33 = scalar_select %p30, %s31, %s32
    %p36 = pneg %p30
    %p37 = scmp.eq.s32.totalorder %s9, 1
    %p38 = por %p36, %p37
    %p39 = scmp.ne.s32.totalorder %s31, %s34
    %p40 = scmp.eq.s32.totalorder %s9, 0
    %p41 = por %p39, %p40
    %p42 = scmp.ne.s32.totalorder %s31, %s34
    %p43 = scmp.eq.s32.totalorder %s14, 1
    %p44 = por %p42, %p43
    %p45 = scmp.ne.s32.totalorder %s34, %s35
    %p46 = scmp.eq.s32.totalorder %s14, 0
    %p47 = por %p45, %p46
    %p48 = scmp.ne.s32.totalorder %s34, %s35
    %p49 = scmp.eq.s32.totalorder %s15, 1
    %p50 = por %p48, %p49
    %p52 = scmp.ne.s32.totalorder %s35, %s51
    %p53 = scmp.eq.s32.totalorder %s15, 0
    %p54 = por %p52, %p53
    %s55 = ssub.s32 %s16, %s28
    %s56 = ssub.s32 %s17, %s24
    %s57 = sor.u32 %s55, %s56
    %p58 = scmp.eq.s32.totalorder %s57, 0
    %s60 = sadd.s32 %s59, 1
    %s61 = scalar_select %p58, %s59, %s60
    %p64 = pneg %p58
    %p65 = scmp.eq.s32.totalorder %s9, 1
    %p66 = por %p64, %p65
    %p67 = scmp.ne.s32.totalorder %s59, %s62
    %p68 = scmp.eq.s32.totalorder %s9, 0
    %p69 = por %p67, %p68
    %p70 = scmp.ne.s32.totalorder %s59, %s62
    %p71 = scmp.eq.s32.totalorder %s14, 1
    %p72 = por %p70, %p71
    %p73 = scmp.ne.s32.totalorder %s62, %s63
    %p74 = scmp.eq.s32.totalorder %s14, 0
    %p75 = por %p73, %p74
    %p76 = scmp.ne.s32.totalorder %s62, %s63
    %p77 = scmp.eq.s32.totalorder %s15, 1
    %p78 = por %p76, %p77
    %p80 = scmp.ne.s32.totalorder %s63, %s79
    %p81 = scmp.eq.s32.totalorder %s15, 0
    %p82 = por %p80, %p81
    %s83 = ssub.s32 %s16, %s28
    %s84 = ssub.s32 %s17, %s24
    %s85 = sor.u32 %s83, %s84
    %p86 = scmp.eq.s32.totalorder %s85, 0
    %s88 = sadd.s32 %s87, 1
    %s89 = scalar_select %p86, %s87, %s88
    %p92 = pneg %p86
    %p93 = scmp.eq.s32.totalorder %s9, 1
    %p94 = por %p92, %p93
    %p95 = scmp.ne.s32.totalorder %s87, %s90
    %p96 = scmp.eq.s32.totalorder %s9, 0
    %p97 = por %p95, %p96
    %p98 = scmp.ne.s32.totalorder %s87, %s90
    %p99 = scmp.eq.s32.totalorder %s14, 1
    %p100 = por %p98, %p99
    %p101 = scmp.ne.s32.totalorder %s90, %s91
    %p102 = scmp.eq.s32.totalorder %s14, 0
    %p103 = por %p101, %p102
    %p104 = scmp.ne.s32.totalorder %s90, %s91
    %p105 = scmp.eq.s32.totalorder %s15, 1
    %p106 = por %p104, %p105
    %p108 = scmp.ne.s32.totalorder %s91, %s107
    %p109 = scmp.eq.s32.totalorder %s15, 0
    %p110 = por %p108, %p109
    %s111 = ssub.s32 %s16, %s28
    %s112 = ssub.s32 %s17, %s24
    %s113 = sor.u32 %s111, %s112
    %p114 = scmp.eq.s32.totalorder %s113, 0
    %s116 = sadd.s32 %s115, 1
    %s117 = scalar_select %p114, %s115, %s116
    %p120 = pneg %p114
    %p121 = scmp.eq.s32.totalorder %s9, 1
    %p122 = por %p120, %p121
    %p123 = scmp.ne.s32.totalorder %s115, %s118
    %p124 = scmp.eq.s32.totalorder %s9, 0
    %p125 = por %p123, %p124
    %p126 = scmp.ne.s32.totalorder %s115, %s118
    %p127 = scmp.eq.s32.totalorder %s14, 1
    %p128 = por %p126, %p127
    %p129 = scmp.ne.s32.totalorder %s118, %s119
    %p130 = scmp.eq.s32.totalorder %s14, 0
    %p131 = por %p129, %p130
    %p132 = scmp.ne.s32.totalorder %s118, %s119
    %p133 = scmp.eq.s32.totalorder %s15, 1
    %p134 = por %p132, %p133
    %p136 = scmp.ne.s32.totalorder %s119, %s135
    %p137 = scmp.eq.s32.totalorder %s15, 0
    %p138 = por %p136, %p137
    %p139 = scmp.le.s32.totalorder 1, %s9
    %p140 = scmp.lt.s32.totalorder %s9, 3
    %p141 = pnand %p139, %p140
    %p142 = pneg %p141
    // Predicated region
    $region9: #{orb_forward.18} parent=5 // pred_check
      _
    $region10: #{orb_forward.18} parent=5 // pred_check_branch
      %144 = sbr.rel (%p141) target = $region12
    $region11: #{orb_forward.18} parent=5 // pred_region
      %s145 = ssub.s32 %s9, 1
    $region12: #{orb_forward.18} parent=5 // pred_fallthru
      _
    %p146 = scmp.lt.s32.totalorder %s9, 2
    // Predicated region
    $region13: #{orb_forward.18} parent=5 // pred_check
      %p147 = pneg %p146
    $region14: #{orb_forward.18} parent=5 // pred_check_branch
      %149 = sbr.rel (%p147) target = $region16
    $region15: #{orb_forward.18} parent=5 // pred_region
      // Predicated region
      $region17: #{orb_forward.18} parent=15 // pred_check
        %p150 = pneg %p41
      $region18: #{orb_forward.18} parent=15 // pred_check_branch
        %152 = sbr.rel (%p150) target = $region20
      $region19: #{orb_forward.18} parent=15 // pred_region
        %p153 = scmp.lt.s32.totalorder %s16, 1
        %s154 = scalar_select %p153, %s16, 1
        %s155 = smul.addr %s154, 8
        %s156 = scalar_lea.vmem %s0, %s155
      $region20: #{orb_forward.18} parent=15 // pred_fallthru
        _
      // Predicated region
      $region21: #{orb_forward.18} parent=15 // pred_check
        %p157 = pneg %p69
      $region22: #{orb_forward.18} parent=15 // pred_check_branch
        %159 = sbr.rel (%p157) target = $region24
      $region23: #{orb_forward.18} parent=15 // pred_region
        %s160 = smul.u32 2, %s17
        %p161 = scmp.lt.s32.totalorder %s16, 1
        %s162 = scalar_select %p161, %s16, 1
        %p163 = scmp.lt.s32.totalorder %s160, 1
        %s164 = scalar_select %p163, %s160, 1
        %s165 = smul.addr %s162, 2
        %s166 = sadd.s32 %s164, %s165
        %s167 = smul.addr %s166, 8
        %s168 = scalar_lea.vmem %s1, %s167
        %s169 = smul.u32 2, %s17
      $region24: #{orb_forward.18} parent=15 // pred_fallthru
        _
      // Predicated region
      $region25: #{orb_forward.18} parent=15 // pred_check
        %p170 = pneg %p97
      $region26: #{orb_forward.18} parent=15 // pred_check_branch
        %172 = sbr.rel (%p170) target = $region28
      $region27: #{orb_forward.18} parent=15 // pred_region
        %s173 = smul.u32 2, %s17
        %p174 = scmp.lt.s32.totalorder %s16, 1
        %s175 = scalar_select %p174, %s16, 1
        %p176 = scmp.lt.s32.totalorder %s173, 1
        %s177 = scalar_select %p176, %s173, 1
        %s178 = smul.addr %s175, 2
        %s179 = sadd.s32 %s177, %s178
        %s180 = smul.addr %s179, 8
        %s181 = scalar_lea.vmem %s2, %s180
        %s182 = smul.u32 2, %s17
      $region28: #{orb_forward.18} parent=15 // pred_fallthru
        _
    $region16: #{orb_forward.18} parent=5 // pred_fallthru
      _
    %p183 = scmp.le.s32.totalorder 1, %s9
    %p184 = scmp.lt.s32.totalorder %s9, 3
    %p185 = pnand %p183, %p184
    %p186 = pneg %p185
    // Predicated region
    $region29: #{orb_forward.18} parent=5 // pred_check
      _
    $region30: #{orb_forward.18} parent=5 // pred_check_branch
      %188 = sbr.rel (%p185) target = $region32
    $region31: #{orb_forward.18} parent=5 // pred_region
      %s189 = ssub.s32 %s9, 1
      %p190 = scmp.lt.s32.totalorder %s18, 1
      %s191 = scalar_select %p190, %s18, 1
      %s192 = smul.addr %s191, 8
      %s193 = scalar_lea.vmem %s0, %s192
      %p194 = pneg %p47
      %p195 = pneg %p44
      %s196 = smul.u32 2, %s19
      %p197 = scmp.lt.s32.totalorder %s18, 1
      %s198 = scalar_select %p197, %s18, 1
      %p199 = scmp.lt.s32.totalorder %s196, 1
      %s200 = scalar_select %p199, %s196, 1
      %s201 = smul.addr %s198, 2
      %s202 = sadd.s32 %s200, %s201
      %s203 = smul.addr %s202, 8
      %s204 = scalar_lea.vmem %s1, %s203
      %p205 = pneg %p75
      %p206 = pneg %p72
      %s207 = smul.u32 2, %s19
      %p208 = scmp.lt.s32.totalorder %s18, 1
      %s209 = scalar_select %p208, %s18, 1
      %p210 = scmp.lt.s32.totalorder %s207, 1
      %s211 = scalar_select %p210, %s207, 1
      %s212 = smul.addr %s209, 2
      %s213 = sadd.s32 %s211, %s212
      %s214 = smul.addr %s213, 8
      %s215 = scalar_lea.vmem %s2, %s214
      %p216 = pneg %p103
      %p217 = pneg %p100
      %p218 = pneg %p131
      %p219 = pneg %p128
      %s220 = smul.u32 2, %s19
      %p221 = scmp.lt.s32.totalorder %s18, 1
      %s222 = scalar_select %p221, %s18, 1
      %p223 = scmp.lt.s32.totalorder %s220, 1
      %s224 = scalar_select %p223, %s220, 1
      %s225 = smul.addr %s222, 2
      %s226 = sadd.s32 %s224, %s225
      %s227 = smul.addr %s226, 8
      %s228 = scalar_lea.vmem %s3, %s227
      %p229 = scmp.lt.s32.totalorder %s18, 1
      %s230 = scalar_select %p229, %s18, 1
      %s231 = smul.addr %s230, 8
      %s232 = scalar_lea.vmem %s0, %s231
      %s233 = smul.u32 2, %s19
      %p234 = scmp.lt.s32.totalorder %s18, 1
      %s235 = scalar_select %p234, %s18, 1
      %p236 = scmp.lt.s32.totalorder %s233, 1
      %s237 = scalar_select %p236, %s233, 1
      %s238 = smul.addr %s235, 2
      %s239 = sadd.s32 %s237, %s238
      %s240 = smul.addr %s239, 8
      %s241 = scalar_lea.vmem %s1, %s240
      %s242 = smul.u32 2, %s19
      %s243 = smul.u32 2, %s19
      %p244 = scmp.lt.s32.totalorder %s18, 1
      %s245 = scalar_select %p244, %s18, 1
      %p246 = scmp.lt.s32.totalorder %s243, 1
      %s247 = scalar_select %p246, %s243, 1
      %s248 = smul.addr %s245, 2
      %s249 = sadd.s32 %s247, %s248
      %s250 = smul.addr %s249, 8
      %s251 = scalar_lea.vmem %s2, %s250
      %s252 = smul.u32 2, %s19
      %s253 = smul.u32 2, %s19
      %p254 = scmp.lt.s32.totalorder %s18, 1
      %s255 = scalar_select %p254, %s18, 1
      %p256 = scmp.lt.s32.totalorder %s253, 1
      %s257 = scalar_select %p256, %s253, 1
      %s258 = smul.addr %s255, 2
      %s259 = sadd.s32 %s257, %s258
      %s260 = smul.addr %s259, 8
      %s261 = scalar_lea.vmem %s3, %s260
      %s262 = smul.u32 2, %s19
      %v263 = vld [vmem:[%s241] sm:$0xff]
      %v264 = vld [vmem:[%s241 + $0x8] sm:$0xff]
      %v265 = vld [vmem:[%s232] sm:$0xff]
      %267 = vset.pattern.permute.xlu0 0
      %268 = vperm.xlu0 %267, %v265
      %v269 = vpop.permute.xlu0 %268
      %v271 = vmul.f32 %v263, %v269
      %v272 = vmul.f32 %v264, %v269
      %v273 = vld [vmem:[%s251] sm:$0xff]
      %v274 = vld [vmem:[%s251 + $0x8] sm:$0xff]
      %v275 = vadd.f32 %v271, %v273
      %v276 = vadd.f32 %v272, %v274
      %277 = vst [vmem:[%s261] sm:$0xff] %v275
      %278 = vst [vmem:[%s261 + $0x8] sm:$0xff] %v276
      %s279 = smul.u32 2, %s19
      %p280 = scmp.lt.s32.totalorder %s18, 1
      %s281 = scalar_select %p280, %s18, 1
      %p282 = scmp.lt.s32.totalorder %s279, 1
      %s283 = scalar_select %p282, %s279, 1
      %s284 = smul.addr %s281, 2
      %s285 = sadd.s32 %s283, %s284
      %s286 = smul.addr %s285, 8
      %s287 = scalar_lea.vmem %s3, %s286
      // Predicated region
      $region33: #{orb_forward.18} parent=31 // pred_check
        %p288 = pneg %p128
      $region34: #{orb_forward.18} parent=31 // pred_check_branch
        %290 = sbr.rel (%p288) target = $region36
      $region35: #{orb_forward.18} parent=31 // pred_region
        %s291 = smul.u32 2, %s19
      $region36: #{orb_forward.18} parent=31 // pred_fallthru
        _
    $region32: #{orb_forward.18} parent=5 // pred_fallthru
      _
    %p292 = scmp.le.s32.totalorder 2, %s9
    // Predicated region
    $region37: #{orb_forward.18} parent=5 // pred_check
      %p293 = pneg %p292
    $region38: #{orb_forward.18} parent=5 // pred_check_branch
      %295 = sbr.rel (%p293) target = $region40
    $region39: #{orb_forward.18} parent=5 // pred_region
      %s296 = ssub.s32 %s9, 2
      // Predicated region
      $region41: #{orb_forward.18} parent=39 // pred_check
        %p297 = pneg %p134
      $region42: #{orb_forward.18} parent=39 // pred_check_branch
        %299 = sbr.rel (%p297) target = $region44
      $region43: #{orb_forward.18} parent=39 // pred_region
        %s300 = smul.u32 2, %s21
        %p301 = scmp.lt.s32.totalorder %s20, 1
        %s302 = scalar_select %p301, %s20, 1
        %p303 = scmp.lt.s32.totalorder %s300, 1
        %s304 = scalar_select %p303, %s300, 1
        %s305 = smul.addr %s302, 2
        %s306 = sadd.s32 %s304, %s305
        %s307 = smul.addr %s306, 8
        %s308 = scalar_lea.vmem %s3, %s307
      $region44: #{orb_forward.18} parent=39 // pred_fallthru
        _
    $region40: #{orb_forward.18} parent=5 // pred_fallthru
      _
  $region6: #{orb_forward.18} parent=0 // loop_footer
    %s13 = sadd.s32 1, %s9
  $region7: #{orb_forward.18} parent=0 // loop_footer_branch
    %8 = sbr.rel target = $region3
  $region8: #{orb_forward.18} parent=0 // loop_exit
    _

</llo_original>
